<compile_context>
chip_gen: v7x
topology: tpu7x:2x2x1
jax: 0.10.0
libtpu: 0.0.40
codegen_flags: <defaults>
</compile_context>

<pallas_src>
import jax
import jax.numpy as jnp
from jax.experimental import pallas as pl
from jax.experimental.pallas import tpu as pltpu

# Layer sizes from the PyTorch module
LAYER_DIMS = [(256, 256), (256, 128), (128, 128), (128, 96), (96, 96)]
D_IN = 256
D_OUT = 96
D_PAD = 128  # lane-dense padding target for the 96-wide dims


def _round_up(n, m):
    return ((n + m - 1) // m) * m


def mlp_kernel(x_ref,
               w1_ref, b1_ref,
               w2_ref, b2_ref,
               w3_ref, b3_ref,
               w4_ref, b4_ref,
               w5_ref, b5_ref,
               o_ref):
    """Fused forward pass: 5 MXU matmuls + VPU ReLUs + EUP sigmoid epilogue.

    Matmuls accumulate in f32; if the weights are bf16 the (f32) activations are
    cast back to bf16 between layers so every layer stays on the native bf16 MXU path.
    """
    cdt = w1_ref.dtype  # matmul operand dtype (f32 or bf16)

    h = jnp.dot(x_ref[...], w1_ref[...], preferred_element_type=jnp.float32) + b1_ref[...]
    h = jnp.maximum(h, 0.0).astype(cdt)

    h = jnp.dot(h, w2_ref[...], preferred_element_type=jnp.float32) + b2_ref[...]
    h = jnp.maximum(h, 0.0).astype(cdt)

    h = jnp.dot(h, w3_ref[...], preferred_element_type=jnp.float32) + b3_ref[...]
    h = jnp.maximum(h, 0.0).astype(cdt)

    h = jnp.dot(h, w4_ref[...], preferred_element_type=jnp.float32) + b4_ref[...]
    h = jnp.maximum(h, 0.0).astype(cdt)

    z = jnp.dot(h, w5_ref[...], preferred_element_type=jnp.float32) + b5_ref[...]
    # sigmoid(z) = 1 / (1 + exp(-z)); exp + approx-reciprocal both run on the EUP.
    o_ref[...] = pl.reciprocal(1.0 + jnp.exp(-z), approx=True).astype(o_ref.dtype)


def movie_name_network_forward(x, params, *, batch_tile=256, use_bf16=False):
    """x: (B, 256) f32. params: list of (W (in,out), b (1,out)). Returns (B, 96) f32."""
    B, d_in = x.shape
    assert d_in == D_IN

    (w1, b1), (w2, b2), (w3, b3), (w4, b4), (w5, b5) = params

    # --- Lane-dense padding of the 96-wide dims to 128 (zeros).
    # Zero columns of W4/b4 produce zero (ReLU'd) lanes in h4; the matching zero
    # rows of W5 make them inert; padded output lanes are sliced off below.
    w4p = jnp.pad(w4, ((0, 0), (0, D_PAD - w4.shape[1])))
    b4p = jnp.pad(b4, ((0, 0), (0, D_PAD - b4.shape[1])))
    w5p = jnp.pad(w5, ((0, D_PAD - w5.shape[0]), (0, D_PAD - w5.shape[1])))
    b5p = jnp.pad(b5, ((0, 0), (0, D_PAD - b5.shape[1])))

    weights = [w1, w2, w3, w4p, w5p]
    biases = [b1, b2, b3, b4p, b5p]

    x_in = x
    if use_bf16:
        # Native bf16 MXU path (v6e/v7x); accumulation stays f32 inside the kernel.
        x_in = x_in.astype(jnp.bfloat16)
        weights = [w.astype(jnp.bfloat16) for w in weights]
        # Biases stay f32 (added to the f32 accumulator).

    # --- Batch tiling: large tiles fill the MXU rows and amortize the ~0.35us/step
    # grid overhead; keep >= 2 grid steps when the batch allows so v7x's two
    # TensorCores both get work via dimension_semantics=("parallel",).
    B8 = _round_up(B, 8)
    bt = min(_round_up(batch_tile, 8), B8)
    if B8 >= 256 and -(-B8 // bt) < 2:
        bt = _round_up(-(-B8 // 2), 8)
    B_pad = _round_up(B8, bt)
    if B_pad != B:
        x_in = jnp.pad(x_in, ((0, B_pad - B), (0, 0)))
    grid = (B_pad // bt,)

    # Weights/biases are small (<1 MiB total) and stay fully VMEM-resident: constant
    # index maps mean they are DMA'd once, only x / out are streamed per grid step.
    # TODO(synk): could mark weight specs pipeline_mode=pl.Buffered(1) to drop their
    # second buffer; skipped as a minor, optional micro-opt.
    in_specs = [pl.BlockSpec((bt, D_IN), lambda i: (i, 0))]
    flat_params = []
    for w, b in zip(weights, biases):
        in_specs.append(pl.BlockSpec(w.shape, lambda i: (0, 0)))
        in_specs.append(pl.BlockSpec(b.shape, lambda i: (0, 0)))
        flat_params.extend([w, b])

    out_spec = pl.BlockSpec((bt, D_PAD), lambda i: (i, 0))

    compiler_kwargs = dict(dimension_semantics=("parallel",))
    if bt > 1024:
        # Very large tiles: raise the scoped-VMEM limit explicitly (keep headroom
        # under v7x's 64 MiB physical VMEM).
        compiler_kwargs["vmem_limit_bytes"] = 48 * 1024 * 1024

    out_padded = pl.pallas_call(
        mlp_kernel,
        out_shape=jax.ShapeDtypeStruct((B_pad, D_PAD), jnp.float32),
        grid_spec=pltpu.PrefetchScalarGridSpec(
            num_scalar_prefetch=0,
            grid=grid,
            in_specs=in_specs,
            out_specs=out_spec,
        ),
        compiler_params=pltpu.CompilerParams(**compiler_kwargs),
    )(x_in, *flat_params)

    return out_padded[:B, :D_OUT]


def init_params(key):
    """Deterministic synthetic init mirroring nn.Linear shapes."""
    params = []
    for (d_in, d_out) in LAYER_DIMS:
        key, kw, kb = jax.random.split(key, 3)
        # PyTorch Linear weight is (out, in); we store its transpose (in, out).
        bound = 1.0 / jnp.sqrt(d_in)
        w = jax.random.uniform(kw, (d_in, d_out), jnp.float32, -bound, bound)
        b = jax.random.uniform(kb, (1, d_out), jnp.float32, -bound, bound)
        params.append((w, b))
    return params


def reference_forward(x, params):
    h = x
    for idx, (w, b) in enumerate(params):
        h = h @ w + b
        if idx < len(params) - 1:
            h = jnp.maximum(h, 0.0)
        else:
            h = jax.nn.sigmoid(h)
    return h


if __name__ == "__main__":
    key = jax.random.PRNGKey(0)
    key, kx = jax.random.split(key)
    params = init_params(key)

    # Small smoke test (single tile).
    B = 8
    x = jax.random.normal(kx, (B, D_IN), jnp.float32)
    out = jax.block_until_ready(movie_name_network_forward(x, params, batch_tile=256))
    ref = reference_forward(x, params)
    assert out.shape == (B, D_OUT)
    # Tolerance accounts for the approx-EUP reciprocal in the sigmoid epilogue.
    assert jnp.allclose(out, ref, atol=2e-3, rtol=2e-3), "f32 mismatch vs reference"

    # Larger batch exercises batch padding + a 2-step "parallel" grid (v7x megacore).
    key, kx2 = jax.random.split(key)
    B2 = 384
    x2 = jax.random.normal(kx2, (B2, D_IN), jnp.float32)
    out2 = jax.block_until_ready(movie_name_network_forward(x2, params, batch_tile=256))
    ref2 = reference_forward(x2, params)
    assert out2.shape == (B2, D_OUT)
    assert jnp.allclose(out2, ref2, atol=2e-3, rtol=2e-3), "tiled f32 mismatch vs reference"

    # bf16 fast path (native MXU throughput on v6e/v7x), looser tolerance.
    out_bf = jax.block_until_ready(
        movie_name_network_forward(x2, params, batch_tile=256, use_bf16=True))
    assert out_bf.shape == (B2, D_OUT)
    assert jnp.allclose(out_bf, ref2, atol=3e-2, rtol=3e-2), "bf16 mismatch vs reference"

    print("KERNEL_OK")
</pallas_src>

<mosaic_0001>
module attributes {stable_mosaic.version = 11 : i64} {
  func.func @mlp_kernel(%arg0: i32, %arg1: memref<8x256xf32, #tpu.memory_space<vmem>>, %arg2: memref<256x256xf32, #tpu.memory_space<vmem>>, %arg3: memref<1x256xf32, #tpu.memory_space<vmem>>, %arg4: memref<256x128xf32, #tpu.memory_space<vmem>>, %arg5: memref<1x128xf32, #tpu.memory_space<vmem>>, %arg6: memref<128x128xf32, #tpu.memory_space<vmem>>, %arg7: memref<1x128xf32, #tpu.memory_space<vmem>>, %arg8: memref<128x128xf32, #tpu.memory_space<vmem>>, %arg9: memref<1x128xf32, #tpu.memory_space<vmem>>, %arg10: memref<128x128xf32, #tpu.memory_space<vmem>>, %arg11: memref<1x128xf32, #tpu.memory_space<vmem>>, %arg12: memref<8x128xf32, #tpu.memory_space<vmem>>) attributes {dimension_semantics = [#tpu.dimension_semantics<parallel>], iteration_bounds = array<i64: 1>, scalar_prefetch = 0 : i64, scratch_operands = 0 : i64, tpu.core_type = #tpu.core_type<tc>, window_params = [{transform_indices = @transform_0, window_bounds = array<i64: 8, 256>}, {pipeline_mode = #tpu.pipeline_mode<synchronous>, transform_indices = @transform_1, window_bounds = array<i64: 256, 256>}, {pipeline_mode = #tpu.pipeline_mode<synchronous>, transform_indices = @transform_2, window_bounds = array<i64: 1, 256>}, {pipeline_mode = #tpu.pipeline_mode<synchronous>, transform_indices = @transform_3, window_bounds = array<i64: 256, 128>}, {pipeline_mode = #tpu.pipeline_mode<synchronous>, transform_indices = @transform_4, window_bounds = array<i64: 1, 128>}, {pipeline_mode = #tpu.pipeline_mode<synchronous>, transform_indices = @transform_5, window_bounds = array<i64: 128, 128>}, {pipeline_mode = #tpu.pipeline_mode<synchronous>, transform_indices = @transform_6, window_bounds = array<i64: 1, 128>}, {pipeline_mode = #tpu.pipeline_mode<synchronous>, transform_indices = @transform_7, window_bounds = array<i64: 128, 128>}, {pipeline_mode = #tpu.pipeline_mode<synchronous>, transform_indices = @transform_8, window_bounds = array<i64: 1, 128>}, {pipeline_mode = #tpu.pipeline_mode<synchronous>, transform_indices = @transform_9, window_bounds = array<i64: 128, 128>}, {pipeline_mode = #tpu.pipeline_mode<synchronous>, transform_indices = @transform_10, window_bounds = array<i64: 1, 128>}, {transform_indices = @transform_11, window_bounds = array<i64: 8, 128>}]} {
    %c0 = arith.constant 0 : index
    %c0_0 = arith.constant 0 : index
    %0 = vector.load %arg1[%c0, %c0_0] : memref<8x256xf32, #tpu.memory_space<vmem>>, vector<8x256xf32>
    %c0_1 = arith.constant 0 : index
    %c0_2 = arith.constant 0 : index
    %1 = vector.load %arg2[%c0_1, %c0_2] : memref<256x256xf32, #tpu.memory_space<vmem>>, vector<256x256xf32>
    %cst = arith.constant dense<0.000000e+00> : vector<8x256xf32>
    %2 = tpu.matmul %0, %1, %cst {dimension_numbers = #tpu.dot_dimension_numbers<[1], [0], [0], [1], [0, 0, 1, 1], [], []>} : vector<8x256xf32>, vector<256x256xf32>, vector<8x256xf32> -> vector<8x256xf32>
    %c0_3 = arith.constant 0 : index
    %c0_4 = arith.constant 0 : index
    %3 = vector.load %arg3[%c0_3, %c0_4] : memref<1x256xf32, #tpu.memory_space<vmem>>, vector<1x256xf32>
    %4 = vector.broadcast %3 : vector<1x256xf32> to vector<8x256xf32>
    %5 = arith.addf %2, %4 : vector<8x256xf32>
    %cst_5 = arith.constant 0.000000e+00 : f32
    %6 = vector.broadcast %cst_5 : f32 to vector<8x256xf32>
    %7 = arith.maximumf %5, %6 : vector<8x256xf32>
    %c0_6 = arith.constant 0 : index
    %c0_7 = arith.constant 0 : index
    %8 = vector.load %arg4[%c0_6, %c0_7] : memref<256x128xf32, #tpu.memory_space<vmem>>, vector<256x128xf32>
    %cst_8 = arith.constant dense<0.000000e+00> : vector<8x128xf32>
    %9 = tpu.matmul %7, %8, %cst_8 {dimension_numbers = #tpu.dot_dimension_numbers<[1], [0], [0], [1], [0, 0, 1, 1], [], []>} : vector<8x256xf32>, vector<256x128xf32>, vector<8x128xf32> -> vector<8x128xf32>
    %c0_9 = arith.constant 0 : index
    %c0_10 = arith.constant 0 : index
    %10 = vector.load %arg5[%c0_9, %c0_10] : memref<1x128xf32, #tpu.memory_space<vmem>>, vector<1x128xf32>
    %11 = vector.broadcast %10 : vector<1x128xf32> to vector<8x128xf32>
    %12 = arith.addf %9, %11 : vector<8x128xf32>
    %cst_11 = arith.constant 0.000000e+00 : f32
    %13 = vector.broadcast %cst_11 : f32 to vector<8x128xf32>
    %14 = arith.maximumf %12, %13 : vector<8x128xf32>
    %c0_12 = arith.constant 0 : index
    %c0_13 = arith.constant 0 : index
    %15 = vector.load %arg6[%c0_12, %c0_13] : memref<128x128xf32, #tpu.memory_space<vmem>>, vector<128x128xf32>
    %cst_14 = arith.constant dense<0.000000e+00> : vector<8x128xf32>
    %16 = tpu.matmul %14, %15, %cst_14 {dimension_numbers = #tpu.dot_dimension_numbers<[1], [0], [0], [1], [0, 0, 1, 1], [], []>} : vector<8x128xf32>, vector<128x128xf32>, vector<8x128xf32> -> vector<8x128xf32>
    %c0_15 = arith.constant 0 : index
    %c0_16 = arith.constant 0 : index
    %17 = vector.load %arg7[%c0_15, %c0_16] : memref<1x128xf32, #tpu.memory_space<vmem>>, vector<1x128xf32>
    %18 = vector.broadcast %17 : vector<1x128xf32> to vector<8x128xf32>
    %19 = arith.addf %16, %18 : vector<8x128xf32>
    %cst_17 = arith.constant 0.000000e+00 : f32
    %20 = vector.broadcast %cst_17 : f32 to vector<8x128xf32>
    %21 = arith.maximumf %19, %20 : vector<8x128xf32>
    %c0_18 = arith.constant 0 : index
    %c0_19 = arith.constant 0 : index
    %22 = vector.load %arg8[%c0_18, %c0_19] : memref<128x128xf32, #tpu.memory_space<vmem>>, vector<128x128xf32>
    %cst_20 = arith.constant dense<0.000000e+00> : vector<8x128xf32>
    %23 = tpu.matmul %21, %22, %cst_20 {dimension_numbers = #tpu.dot_dimension_numbers<[1], [0], [0], [1], [0, 0, 1, 1], [], []>} : vector<8x128xf32>, vector<128x128xf32>, vector<8x128xf32> -> vector<8x128xf32>
    %c0_21 = arith.constant 0 : index
    %c0_22 = arith.constant 0 : index
    %24 = vector.load %arg9[%c0_21, %c0_22] : memref<1x128xf32, #tpu.memory_space<vmem>>, vector<1x128xf32>
    %25 = vector.broadcast %24 : vector<1x128xf32> to vector<8x128xf32>
    %26 = arith.addf %23, %25 : vector<8x128xf32>
    %cst_23 = arith.constant 0.000000e+00 : f32
    %27 = vector.broadcast %cst_23 : f32 to vector<8x128xf32>
    %28 = arith.maximumf %26, %27 : vector<8x128xf32>
    %c0_24 = arith.constant 0 : index
    %c0_25 = arith.constant 0 : index
    %29 = vector.load %arg10[%c0_24, %c0_25] : memref<128x128xf32, #tpu.memory_space<vmem>>, vector<128x128xf32>
    %cst_26 = arith.constant dense<0.000000e+00> : vector<8x128xf32>
    %30 = tpu.matmul %28, %29, %cst_26 {dimension_numbers = #tpu.dot_dimension_numbers<[1], [0], [0], [1], [0, 0, 1, 1], [], []>} : vector<8x128xf32>, vector<128x128xf32>, vector<8x128xf32> -> vector<8x128xf32>
    %c0_27 = arith.constant 0 : index
    %c0_28 = arith.constant 0 : index
    %31 = vector.load %arg11[%c0_27, %c0_28] : memref<1x128xf32, #tpu.memory_space<vmem>>, vector<1x128xf32>
    %32 = vector.broadcast %31 : vector<1x128xf32> to vector<8x128xf32>
    %33 = arith.addf %30, %32 : vector<8x128xf32>
    %cst_29 = arith.constant 0.000000e+00 : f32
    %34 = vector.broadcast %cst_29 : f32 to vector<8x128xf32>
    %35 = arith.subf %34, %33 : vector<8x128xf32>
    %36 = math.exp %35 : vector<8x128xf32>
    %cst_30 = arith.constant 1.000000e+00 : f32
    %37 = vector.broadcast %cst_30 : f32 to vector<8x128xf32>
    %38 = arith.addf %37, %36 : vector<8x128xf32>
    %39 = tpu.reciprocal %38 {approx = true} : vector<8x128xf32> -> vector<8x128xf32>
    %c0_31 = arith.constant 0 : index
    %c0_32 = arith.constant 0 : index
    %40 = vector.load %arg12[%c0_31, %c0_32] : memref<8x128xf32, #tpu.memory_space<vmem>>, vector<8x128xf32>
    tpu.vector_store %arg12[%c0_31, %c0_32], %39 {strides = array<i32>} : memref<8x128xf32, #tpu.memory_space<vmem>>, vector<8x128xf32>,
    return
  }
  func.func @transform_0(%arg0: i32) -> (i32, i32) {
    %c0_i32 = arith.constant 0 : i32
    %c0_i32_0 = arith.constant 0 : i32
    return %arg0, %c0_i32 : i32, i32
  }
  func.func @transform_1(%arg0: i32) -> (i32, i32) {
    %c0_i32 = arith.constant 0 : i32
    %c0_i32_0 = arith.constant 0 : i32
    %c0_i32_1 = arith.constant 0 : i32
    return %c0_i32, %c0_i32_0 : i32, i32
  }
  func.func @transform_2(%arg0: i32) -> (i32, i32) {
    %c0_i32 = arith.constant 0 : i32
    %c0_i32_0 = arith.constant 0 : i32
    %c0_i32_1 = arith.constant 0 : i32
    return %c0_i32, %c0_i32_0 : i32, i32
  }
  func.func @transform_3(%arg0: i32) -> (i32, i32) {
    %c0_i32 = arith.constant 0 : i32
    %c0_i32_0 = arith.constant 0 : i32
    %c0_i32_1 = arith.constant 0 : i32
    return %c0_i32, %c0_i32_0 : i32, i32
  }
  func.func @transform_4(%arg0: i32) -> (i32, i32) {
    %c0_i32 = arith.constant 0 : i32
    %c0_i32_0 = arith.constant 0 : i32
    %c0_i32_1 = arith.constant 0 : i32
    return %c0_i32, %c0_i32_0 : i32, i32
  }
  func.func @transform_5(%arg0: i32) -> (i32, i32) {
    %c0_i32 = arith.constant 0 : i32
    %c0_i32_0 = arith.constant 0 : i32
    %c0_i32_1 = arith.constant 0 : i32
    return %c0_i32, %c0_i32_0 : i32, i32
  }
  func.func @transform_6(%arg0: i32) -> (i32, i32) {
    %c0_i32 = arith.constant 0 : i32
    %c0_i32_0 = arith.constant 0 : i32
    %c0_i32_1 = arith.constant 0 : i32
    return %c0_i32, %c0_i32_0 : i32, i32
  }
  func.func @transform_7(%arg0: i32) -> (i32, i32) {
    %c0_i32 = arith.constant 0 : i32
    %c0_i32_0 = arith.constant 0 : i32
    %c0_i32_1 = arith.constant 0 : i32
    return %c0_i32, %c0_i32_0 : i32, i32
  }
  func.func @transform_8(%arg0: i32) -> (i32, i32) {
    %c0_i32 = arith.constant 0 : i32
    %c0_i32_0 = arith.constant 0 : i32
    %c0_i32_1 = arith.constant 0 : i32
    return %c0_i32, %c0_i32_0 : i32, i32
  }
  func.func @transform_9(%arg0: i32) -> (i32, i32) {
    %c0_i32 = arith.constant 0 : i32
    %c0_i32_0 = arith.constant 0 : i32
    %c0_i32_1 = arith.constant 0 : i32
    return %c0_i32, %c0_i32_0 : i32, i32
  }
  func.func @transform_10(%arg0: i32) -> (i32, i32) {
    %c0_i32 = arith.constant 0 : i32
    %c0_i32_0 = arith.constant 0 : i32
    %c0_i32_1 = arith.constant 0 : i32
    return %c0_i32, %c0_i32_0 : i32, i32
  }
  func.func @transform_11(%arg0: i32) -> (i32, i32) {
    %c0_i32 = arith.constant 0 : i32
    %c0_i32_0 = arith.constant 0 : i32
    return %arg0, %c0_i32 : i32, i32
  }
}

</mosaic_0001>

<llo_original>
// kernel: tpu_custom_call.1
$region0: #{tpu_custom_call.1}
  #allocation0 [shape = 'u32[]', space=smem, size = 0x4, offset = 0x4, fixed_abs, tag = 'smem constant byte address 0x4 - core index']
  #allocation1 [shape = 'u32[144,128]{1,0:T(1,128)}', space=vmem, size = 0x12000, scoped, tag = 'internal scratch']
  %s0 = inlined_call_operand.hbm [shape: f32[8,256], index: 0, kind: input, shape index: {}]
  %s1 = inlined_call_operand.hbm [shape: f32[256,256], index: 1, kind: input, shape index: {}]
  %s2 = inlined_call_operand.vmem [shape: f32[1,256], index: 2, kind: input, shape index: {}]
  %s3 = inlined_call_operand.hbm [shape: f32[256,128], index: 3, kind: input, shape index: {}]
  %s4 = inlined_call_operand.vmem [shape: f32[1,128], index: 4, kind: input, shape index: {}]
  %s5 = inlined_call_operand.hbm [shape: f32[128,128], index: 5, kind: input, shape index: {}]
  %s6 = inlined_call_operand.vmem [shape: f32[1,128], index: 6, kind: input, shape index: {}]
  %s7 = inlined_call_operand.hbm [shape: f32[128,128], index: 7, kind: input, shape index: {}]
  %s8 = inlined_call_operand.vmem [shape: f32[1,128], index: 8, kind: input, shape index: {}]
  %s9 = inlined_call_operand.hbm [shape: f32[128,128], index: 9, kind: input, shape index: {}]
  %s10 = inlined_call_operand.vmem [shape: f32[1,128], index: 10, kind: input, shape index: {}]
  %s11 = inlined_call_operand.hbm [shape: f32[8,128], index: 11, kind: output, shape index: {}]
  %s12 = sld [smem:[#allocation0]]
  $region78: #{tpu_custom_call.1} parent=0
    _
  %s14 = ssub.s32 1, %s12
  %s15 = scalar_select 0, %s14, %s12
  $region1: #{tpu_custom_call.1} parent=0
    #allocation2 [shape = 'u8[8192]{0}', space=vmem, size = 0x2000, scoped, tag = 'input window, operand 0, single buffered']
    #allocation3 [shape = 's32[1]{0}', space=sflag, size = 0x4, scoped, tag = 'scoped memory for tpu_custom_call.1']
    #allocation4 [shape = 's32[1]{0}', space=sflag, size = 0x4, scoped, tag = 'scoped memory for tpu_custom_call.1']
    #allocation5 [shape = 'u8[262144]{0}', space=vmem, size = 0x40000, scoped, tag = 'input window, operand 1, single buffered']
    #allocation6 [shape = 's32[1]{0}', space=sflag, size = 0x4, scoped, tag = 'scoped memory for tpu_custom_call.1']
    #allocation7 [shape = 'u8[131072]{0}', space=vmem, size = 0x20000, scoped, tag = 'input window, operand 3, single buffered']
    #allocation8 [shape = 'u8[65536]{0}', space=vmem, size = 0x10000, scoped, tag = 'input window, operand 5, single buffered']
    #allocation9 [shape = 's32[1]{0}', space=sflag, size = 0x4, scoped, tag = 'scoped memory for tpu_custom_call.1']
    #allocation10 [shape = 'u8[65536]{0}', space=vmem, size = 0x10000, scoped, tag = 'input window, operand 7, single buffered']
    #allocation11 [shape = 'u8[65536]{0}', space=vmem, size = 0x10000, scoped, tag = 'input window, operand 9, single buffered']
    #allocation12 [shape = 's32[1]{0}', space=sflag, size = 0x4, scoped, tag = 'scoped memory for tpu_custom_call.1']
    #allocation13 [shape = 'u8[4096]{0}', space=vmem, size = 0x1000, scoped, tag = 'output window, operand 0, single buffered']
    %16 = vsyncpa [#allocation3], 0
    %17 = vsyncpa [#allocation6], 0
    %18 = vsyncpa [#allocation9], 0
    %19 = vsyncpa [#allocation12], 0
    %20 = vsyncpa [#allocation4], 0
    // Predicated region
    $region2: #{tpu_custom_call.1} parent=1 // pred_check
      _
    $region3: #{tpu_custom_call.1} parent=1 // pred_check_branch
      %22 = sbr.rel (0) target = $region5
    $region4: #{tpu_custom_call.1} parent=1 // pred_region
      %s24 = ssub.s32 256, 256
      %25 = vsyncadd [#allocation3], %s24
      %s27 = sshll.u32 [#allocation2], 4
      %s28 = int_to_ptr.vmem [resolvable:$true] %s27
      %30 = dma.hbm_to_vmem [thread:$0]  %s0, 256, %s28, [#allocation3]
    $region5: #{tpu_custom_call.1} parent=1 // pred_fallthru
      _
    // Predicated region
    $region6: #{tpu_custom_call.1} parent=1 // pred_check
      _
    $region7: #{tpu_custom_call.1} parent=1 // pred_check_branch
      %32 = sbr.rel (0) target = $region9
    $region8: #{tpu_custom_call.1} parent=1 // pred_region
      %s34 = ssub.s32 8192, 8192
      %35 = vsyncadd [#allocation6], %s34
      %s36 = sshll.u32 [#allocation5], 4
      %s37 = int_to_ptr.vmem [resolvable:$true] %s36
      %42 = dma.hbm_to_vmem [thread:$0]  %s1, 8192, %s37, [#allocation6], 256, 256, 16
    $region9: #{tpu_custom_call.1} parent=1 // pred_fallthru
      _
    // Predicated region
    $region10: #{tpu_custom_call.1} parent=1 // pred_check
      _
    $region11: #{tpu_custom_call.1} parent=1 // pred_check_branch
      %44 = sbr.rel (0) target = $region13
    $region12: #{tpu_custom_call.1} parent=1 // pred_region
      _
    $region13: #{tpu_custom_call.1} parent=1 // pred_fallthru
      _
    // Predicated region
    $region14: #{tpu_custom_call.1} parent=1 // pred_check
      _
    $region15: #{tpu_custom_call.1} parent=1 // pred_check_branch
      %46 = sbr.rel (0) target = $region17
    $region16: #{tpu_custom_call.1} parent=1 // pred_region
      %s48 = ssub.s32 4096, 4096
      %49 = vsyncadd [#allocation6], %s48
      %s50 = sshll.u32 [#allocation7], 4
      %s51 = int_to_ptr.vmem [resolvable:$true] %s50
      %56 = dma.hbm_to_vmem [thread:$0]  %s3, 4096, %s51, [#allocation6], 128, 128, 8
    $region17: #{tpu_custom_call.1} parent=1 // pred_fallthru
      _
    // Predicated region
    $region18: #{tpu_custom_call.1} parent=1 // pred_check
      _
    $region19: #{tpu_custom_call.1} parent=1 // pred_check_branch
      %58 = sbr.rel (0) target = $region21
    $region20: #{tpu_custom_call.1} parent=1 // pred_region
      _
    $region21: #{tpu_custom_call.1} parent=1 // pred_fallthru
      _
    // Predicated region
    $region22: #{tpu_custom_call.1} parent=1 // pred_check
      _
    $region23: #{tpu_custom_call.1} parent=1 // pred_check_branch
      %60 = sbr.rel (0) target = $region25
    $region24: #{tpu_custom_call.1} parent=1 // pred_region
      %s62 = ssub.s32 2048, 2048
      %63 = vsyncadd [#allocation9], %s62
      %s64 = sshll.u32 [#allocation8], 4
      %s65 = int_to_ptr.vmem [resolvable:$true] %s64
      %70 = dma.hbm_to_vmem [thread:$0]  %s5, 2048, %s65, [#allocation9], 128, 128, 8
    $region25: #{tpu_custom_call.1} parent=1 // pred_fallthru
      _
    // Predicated region
    $region26: #{tpu_custom_call.1} parent=1 // pred_check
      _
    $region27: #{tpu_custom_call.1} parent=1 // pred_check_branch
      %72 = sbr.rel (0) target = $region29
    $region28: #{tpu_custom_call.1} parent=1 // pred_region
      _
    $region29: #{tpu_custom_call.1} parent=1 // pred_fallthru
      _
    // Predicated region
    $region30: #{tpu_custom_call.1} parent=1 // pred_check
      _
    $region31: #{tpu_custom_call.1} parent=1 // pred_check_branch
      %74 = sbr.rel (0) target = $region33
    $region32: #{tpu_custom_call.1} parent=1 // pred_region
      %s76 = ssub.s32 2048, 2048
      %77 = vsyncadd [#allocation9], %s76
      %s78 = sshll.u32 [#allocation10], 4
      %s79 = int_to_ptr.vmem [resolvable:$true] %s78
      %84 = dma.hbm_to_vmem [thread:$0]  %s7, 2048, %s79, [#allocation9], 128, 128, 8
    $region33: #{tpu_custom_call.1} parent=1 // pred_fallthru
      _
    // Predicated region
    $region34: #{tpu_custom_call.1} parent=1 // pred_check
      _
    $region35: #{tpu_custom_call.1} parent=1 // pred_check_branch
      %86 = sbr.rel (0) target = $region37
    $region36: #{tpu_custom_call.1} parent=1 // pred_region
      _
    $region37: #{tpu_custom_call.1} parent=1 // pred_fallthru
      _
    // Predicated region
    $region38: #{tpu_custom_call.1} parent=1 // pred_check
      _
    $region39: #{tpu_custom_call.1} parent=1 // pred_check_branch
      %88 = sbr.rel (0) target = $region41
    $region40: #{tpu_custom_call.1} parent=1 // pred_region
      %s90 = ssub.s32 2048, 2048
      %91 = vsyncadd [#allocation12], %s90
      %s92 = sshll.u32 [#allocation11], 4
      %s93 = int_to_ptr.vmem [resolvable:$true] %s92
      %98 = dma.hbm_to_vmem [thread:$0]  %s9, 2048, %s93, [#allocation12], 128, 128, 8
    $region41: #{tpu_custom_call.1} parent=1 // pred_fallthru
      _
    // Predicated region
    $region42: #{tpu_custom_call.1} parent=1 // pred_check
      _
    $region43: #{tpu_custom_call.1} parent=1 // pred_check_branch
      %100 = sbr.rel (0) target = $region45
    $region44: #{tpu_custom_call.1} parent=1 // pred_region
      _
    $region45: #{tpu_custom_call.1} parent=1 // pred_fallthru
      _
    // Predicated region
    $region46: #{tpu_custom_call.1} parent=1 // pred_check
      _
    $region47: #{tpu_custom_call.1} parent=1 // pred_check_branch
      %102 = sbr.rel (0) target = $region49
    $region48: #{tpu_custom_call.1} parent=1 // pred_region
      %103 = dma.done [#allocation3], 256
    $region49: #{tpu_custom_call.1} parent=1 // pred_fallthru
      _
    // Predicated region
    $region50: #{tpu_custom_call.1} parent=1 // pred_check
      _
    $region51: #{tpu_custom_call.1} parent=1 // pred_check_branch
      %105 = sbr.rel (0) target = $region53
    $region52: #{tpu_custom_call.1} parent=1 // pred_region
      %106 = dma.done [#allocation6], 8192
    $region53: #{tpu_custom_call.1} parent=1 // pred_fallthru
      _
    // Predicated region
    $region54: #{tpu_custom_call.1} parent=1 // pred_check
      _
    $region55: #{tpu_custom_call.1} parent=1 // pred_check_branch
      %108 = sbr.rel (0) target = $region57
    $region56: #{tpu_custom_call.1} parent=1 // pred_region
      %109 = dma.done [#allocation6], 4096
    $region57: #{tpu_custom_call.1} parent=1 // pred_fallthru
      _
    // Predicated region
    $region58: #{tpu_custom_call.1} parent=1 // pred_check
      _
    $region59: #{tpu_custom_call.1} parent=1 // pred_check_branch
      %111 = sbr.rel (0) target = $region61
    $region60: #{tpu_custom_call.1} parent=1 // pred_region
      %112 = dma.done [#allocation9], 2048
    $region61: #{tpu_custom_call.1} parent=1 // pred_fallthru
      _
    // Predicated region
    $region62: #{tpu_custom_call.1} parent=1 // pred_check
      _
    $region63: #{tpu_custom_call.1} parent=1 // pred_check_branch
      %114 = sbr.rel (0) target = $region65
    $region64: #{tpu_custom_call.1} parent=1 // pred_region
      %115 = dma.done [#allocation9], 2048
    $region65: #{tpu_custom_call.1} parent=1 // pred_fallthru
      _
    // Predicated region
    $region66: #{tpu_custom_call.1} parent=1 // pred_check
      _
    $region67: #{tpu_custom_call.1} parent=1 // pred_check_branch
      %117 = sbr.rel (0) target = $region69
    $region68: #{tpu_custom_call.1} parent=1 // pred_region
      %118 = dma.done [#allocation12], 2048
    $region69: #{tpu_custom_call.1} parent=1 // pred_fallthru
      _
    %v119 = vld [vmem:[#allocation2] sm:$0xff]
    %v120 = vld [vmem:[#allocation2 + $0x8] sm:$0xff]
    %v121 = vld [vmem:[#allocation5] sm:$0xff]
    %v122 = vld [vmem:[#allocation5 + $0x8] sm:$0xff]
    %v123 = vld [vmem:[#allocation5 + $0x10] sm:$0xff]
    %v124 = vld [vmem:[#allocation5 + $0x18] sm:$0xff]
    %v125 = vld [vmem:[#allocation5 + $0x20] sm:$0xff]
    %v126 = vld [vmem:[#allocation5 + $0x28] sm:$0xff]
    %v127 = vld [vmem:[#allocation5 + $0x30] sm:$0xff]
    %v128 = vld [vmem:[#allocation5 + $0x38] sm:$0xff]
    %v129 = vld [vmem:[#allocation5 + $0x40] sm:$0xff]
    %v130 = vld [vmem:[#allocation5 + $0x48] sm:$0xff]
    %v131 = vld [vmem:[#allocation5 + $0x50] sm:$0xff]
    %v132 = vld [vmem:[#allocation5 + $0x58] sm:$0xff]
    %v133 = vld [vmem:[#allocation5 + $0x60] sm:$0xff]
    %v134 = vld [vmem:[#allocation5 + $0x68] sm:$0xff]
    %v135 = vld [vmem:[#allocation5 + $0x70] sm:$0xff]
    %v136 = vld [vmem:[#allocation5 + $0x78] sm:$0xff]
    %v137 = vld [vmem:[#allocation5 + $0x80] sm:$0xff]
    %v138 = vld [vmem:[#allocation5 + $0x88] sm:$0xff]
    %v139 = vld [vmem:[#allocation5 + $0x90] sm:$0xff]
    %v140 = vld [vmem:[#allocation5 + $0x98] sm:$0xff]
    %v141 = vld [vmem:[#allocation5 + $0xa0] sm:$0xff]
    %v142 = vld [vmem:[#allocation5 + $0xa8] sm:$0xff]
    %v143 = vld [vmem:[#allocation5 + $0xb0] sm:$0xff]
    %v144 = vld [vmem:[#allocation5 + $0xb8] sm:$0xff]
    %v145 = vld [vmem:[#allocation5 + $0xc0] sm:$0xff]
    %v146 = vld [vmem:[#allocation5 + $0xc8] sm:$0xff]
    %v147 = vld [vmem:[#allocation5 + $0xd0] sm:$0xff]
    %v148 = vld [vmem:[#allocation5 + $0xd8] sm:$0xff]
    %v149 = vld [vmem:[#allocation5 + $0xe0] sm:$0xff]
    %v150 = vld [vmem:[#allocation5 + $0xe8] sm:$0xff]
    %v151 = vld [vmem:[#allocation5 + $0xf0] sm:$0xff]
    %v152 = vld [vmem:[#allocation5 + $0xf8] sm:$0xff]
    %v153 = vld [vmem:[#allocation5 + $0x100] sm:$0xff]
    %v154 = vld [vmem:[#allocation5 + $0x108] sm:$0xff]
    %v155 = vld [vmem:[#allocation5 + $0x110] sm:$0xff]
    %v156 = vld [vmem:[#allocation5 + $0x118] sm:$0xff]
    %v157 = vld [vmem:[#allocation5 + $0x120] sm:$0xff]
    %v158 = vld [vmem:[#allocation5 + $0x128] sm:$0xff]
    %v159 = vld [vmem:[#allocation5 + $0x130] sm:$0xff]
    %v160 = vld [vmem:[#allocation5 + $0x138] sm:$0xff]
    %v161 = vld [vmem:[#allocation5 + $0x140] sm:$0xff]
    %v162 = vld [vmem:[#allocation5 + $0x148] sm:$0xff]
    %v163 = vld [vmem:[#allocation5 + $0x150] sm:$0xff]
    %v164 = vld [vmem:[#allocation5 + $0x158] sm:$0xff]
    %v165 = vld [vmem:[#allocation5 + $0x160] sm:$0xff]
    %v166 = vld [vmem:[#allocation5 + $0x168] sm:$0xff]
    %v167 = vld [vmem:[#allocation5 + $0x170] sm:$0xff]
    %v168 = vld [vmem:[#allocation5 + $0x178] sm:$0xff]
    %v169 = vld [vmem:[#allocation5 + $0x180] sm:$0xff]
    %v170 = vld [vmem:[#allocation5 + $0x188] sm:$0xff]
    %v171 = vld [vmem:[#allocation5 + $0x190] sm:$0xff]
    %v172 = vld [vmem:[#allocation5 + $0x198] sm:$0xff]
    %v173 = vld [vmem:[#allocation5 + $0x1a0] sm:$0xff]
    %v174 = vld [vmem:[#allocation5 + $0x1a8] sm:$0xff]
    %v175 = vld [vmem:[#allocation5 + $0x1b0] sm:$0xff]
    %v176 = vld [vmem:[#allocation5 + $0x1b8] sm:$0xff]
    %v177 = vld [vmem:[#allocation5 + $0x1c0] sm:$0xff]
    %v178 = vld [vmem:[#allocation5 + $0x1c8] sm:$0xff]
    %v179 = vld [vmem:[#allocation5 + $0x1d0] sm:$0xff]
    %v180 = vld [vmem:[#allocation5 + $0x1d8] sm:$0xff]
    %v181 = vld [vmem:[#allocation5 + $0x1e0] sm:$0xff]
    %v182 = vld [vmem:[#allocation5 + $0x1e8] sm:$0xff]
    %v183 = vld [vmem:[#allocation5 + $0x1f0] sm:$0xff]
    %v184 = vld [vmem:[#allocation5 + $0x1f8] sm:$0xff]
    %v185 = vld [vmem:[%s2] sm:$0x3]
    %v187 = vlaneseq
    %v188 = vshrl.u32 %v187, 7
    %v189 = vsub.s32 0, %v188
    %v190 = vrot.slane %v185, %v189
    %v191 = vlaneseq
    %v192 = vshrl.u32 %v191, 7
    %v193 = vsub.s32 1, %v192
    %v194 = vrot.slane %v185, %v193
    %197 = vmatprep.subr.mxu0 %v122
    %198 = vmatpush1.msra.mxu0 %v121
    %199 = vmatprep.subr.mxu0 %v124
    %200 = vmatpush1.msra.mxu0 %v123
    %201 = vmatprep.subr.mxu0 %v126
    %202 = vmatpush1.msra.mxu0 %v125
    %203 = vmatprep.subr.mxu0 %v128
    %204 = vmatpush1.msra.mxu0 %v127
    %205 = vmatprep.subr.mxu0 %v130
    %206 = vmatpush1.msra.mxu0 %v129
    %207 = vmatprep.subr.mxu0 %v132
    %208 = vmatpush1.msra.mxu0 %v131
    %209 = vmatprep.subr.mxu0 %v134
    %210 = vmatpush1.msra.mxu0 %v133
    %211 = vmatprep.subr.mxu0 %v136
    %212 = vmatpush1.msra.mxu0 %v135
    %213 = vmatprep.subr.mxu0 %v138
    %214 = vmatpush1.msra.mxu0 %v137
    %215 = vmatprep.subr.mxu0 %v140
    %216 = vmatpush1.msra.mxu0 %v139
    %217 = vmatprep.subr.mxu0 %v142
    %218 = vmatpush1.msra.mxu0 %v141
    %219 = vmatprep.subr.mxu0 %v144
    %220 = vmatpush1.msra.mxu0 %v143
    %221 = vmatprep.subr.mxu0 %v146
    %222 = vmatpush1.msra.mxu0 %v145
    %223 = vmatprep.subr.mxu0 %v148
    %224 = vmatpush1.msra.mxu0 %v147
    %225 = vmatprep.subr.mxu0 %v150
    %226 = vmatpush1.msra.mxu0 %v149
    %227 = vmatprep.subr.mxu0 %v152
    %228 = vmatpush1.msra.mxu0 %v151
    %229 = vmatprep.subr.mxu0 %v154
    %230 = vmatpush1.msra.mxu0 %v153
    %231 = vmatprep.subr.mxu0 %v156
    %232 = vmatpush1.msra.mxu0 %v155
    %233 = vmatprep.subr.mxu0 %v158
    %234 = vmatpush1.msra.mxu0 %v157
    %235 = vmatprep.subr.mxu0 %v160
    %236 = vmatpush1.msra.mxu0 %v159
    %237 = vmatprep.subr.mxu0 %v162
    %238 = vmatpush1.msra.mxu0 %v161
    %239 = vmatprep.subr.mxu0 %v164
    %240 = vmatpush1.msra.mxu0 %v163
    %241 = vmatprep.subr.mxu0 %v166
    %242 = vmatpush1.msra.mxu0 %v165
    %243 = vmatprep.subr.mxu0 %v168
    %244 = vmatpush1.msra.mxu0 %v167
    %245 = vmatprep.subr.mxu0 %v170
    %246 = vmatpush1.msra.mxu0 %v169
    %247 = vmatprep.subr.mxu0 %v172
    %248 = vmatpush1.msra.mxu0 %v171
    %249 = vmatprep.subr.mxu0 %v174
    %250 = vmatpush1.msra.mxu0 %v173
    %251 = vmatprep.subr.mxu0 %v176
    %252 = vmatpush1.msra.mxu0 %v175
    %253 = vmatprep.subr.mxu0 %v178
    %254 = vmatpush1.msra.mxu0 %v177
    %255 = vmatprep.subr.mxu0 %v180
    %256 = vmatpush1.msra.mxu0 %v179
    %257 = vmatprep.subr.mxu0 %v182
    %258 = vmatpush1.msra.mxu0 %v181
    %259 = vmatprep.subr.mxu0 %v184
    %260 = vmatpush1.msra.mxu0 %v183
    %261 = vmatprep.mubr.f32.mxu0 %v120
    %262 = vmatmul.mubr.f32.gmra.mrb[0].mxu0 %v119
    %v263 = vpop.f32.mrb[0].mxu0
    %v264 = vadd.f32 %v190, %v263
    %v265 = vpop.f32.mrb[0].mxu0
    %v266 = vadd.f32 %v194, %v265
    %267 = vdwg.mxu0
    %v268 = vmax.f32 %v264, 0.0
    %v269 = vmax.f32 %v266, 0.0
    %v270 = vld [vmem:[#allocation7] sm:$0xff]
    %v271 = vld [vmem:[#allocation7 + $0x8] sm:$0xff]
    %v272 = vld [vmem:[#allocation7 + $0x10] sm:$0xff]
    %v273 = vld [vmem:[#allocation7 + $0x18] sm:$0xff]
    %v274 = vld [vmem:[#allocation7 + $0x20] sm:$0xff]
    %v275 = vld [vmem:[#allocation7 + $0x28] sm:$0xff]
    %v276 = vld [vmem:[#allocation7 + $0x30] sm:$0xff]
    %v277 = vld [vmem:[#allocation7 + $0x38] sm:$0xff]
    %v278 = vld [vmem:[#allocation7 + $0x40] sm:$0xff]
    %v279 = vld [vmem:[#allocation7 + $0x48] sm:$0xff]
    %v280 = vld [vmem:[#allocation7 + $0x50] sm:$0xff]
    %v281 = vld [vmem:[#allocation7 + $0x58] sm:$0xff]
    %v282 = vld [vmem:[#allocation7 + $0x60] sm:$0xff]
    %v283 = vld [vmem:[#allocation7 + $0x68] sm:$0xff]
    %v284 = vld [vmem:[#allocation7 + $0x70] sm:$0xff]
    %v285 = vld [vmem:[#allocation7 + $0x78] sm:$0xff]
    %v286 = vld [vmem:[#allocation7 + $0x80] sm:$0xff]
    %v287 = vld [vmem:[#allocation7 + $0x88] sm:$0xff]
    %v288 = vld [vmem:[#allocation7 + $0x90] sm:$0xff]
    %v289 = vld [vmem:[#allocation7 + $0x98] sm:$0xff]
    %v290 = vld [vmem:[#allocation7 + $0xa0] sm:$0xff]
    %v291 = vld [vmem:[#allocation7 + $0xa8] sm:$0xff]
    %v292 = vld [vmem:[#allocation7 + $0xb0] sm:$0xff]
    %v293 = vld [vmem:[#allocation7 + $0xb8] sm:$0xff]
    %v294 = vld [vmem:[#allocation7 + $0xc0] sm:$0xff]
    %v295 = vld [vmem:[#allocation7 + $0xc8] sm:$0xff]
    %v296 = vld [vmem:[#allocation7 + $0xd0] sm:$0xff]
    %v297 = vld [vmem:[#allocation7 + $0xd8] sm:$0xff]
    %v298 = vld [vmem:[#allocation7 + $0xe0] sm:$0xff]
    %v299 = vld [vmem:[#allocation7 + $0xe8] sm:$0xff]
    %v300 = vld [vmem:[#allocation7 + $0xf0] sm:$0xff]
    %v301 = vld [vmem:[#allocation7 + $0xf8] sm:$0xff]
    %v302 = vld [vmem:[%s4] sm:$0x1]
    %v304 = vlaneseq
    %v305 = vshrl.u32 %v304, 7
    %v306 = vsub.s32 0, %v305
    %v307 = vrot.slane %v302, %v306
    %309 = vmatprep.subr.mxu0 0.0
    %310 = vmatpush1.msra.mxu0 %v270
    %311 = vmatprep.subr.mxu0 0.0
    %312 = vmatpush1.msra.mxu0 %v271
    %313 = vmatprep.subr.mxu0 0.0
    %314 = vmatpush1.msra.mxu0 %v272
    %315 = vmatprep.subr.mxu0 0.0
    %316 = vmatpush1.msra.mxu0 %v273
    %317 = vmatprep.subr.mxu0 0.0
    %318 = vmatpush1.msra.mxu0 %v274
    %319 = vmatprep.subr.mxu0 0.0
    %320 = vmatpush1.msra.mxu0 %v275
    %321 = vmatprep.subr.mxu0 0.0
    %322 = vmatpush1.msra.mxu0 %v276
    %323 = vmatprep.subr.mxu0 0.0
    %324 = vmatpush1.msra.mxu0 %v277
    %325 = vmatprep.subr.mxu0 0.0
    %326 = vmatpush1.msra.mxu0 %v278
    %327 = vmatprep.subr.mxu0 0.0
    %328 = vmatpush1.msra.mxu0 %v279
    %329 = vmatprep.subr.mxu0 0.0
    %330 = vmatpush1.msra.mxu0 %v280
    %331 = vmatprep.subr.mxu0 0.0
    %332 = vmatpush1.msra.mxu0 %v281
    %333 = vmatprep.subr.mxu0 0.0
    %334 = vmatpush1.msra.mxu0 %v282
    %335 = vmatprep.subr.mxu0 0.0
    %336 = vmatpush1.msra.mxu0 %v283
    %337 = vmatprep.subr.mxu0 0.0
    %338 = vmatpush1.msra.mxu0 %v284
    %339 = vmatprep.subr.mxu0 0.0
    %340 = vmatpush1.msra.mxu0 %v285
    %341 = vmatprep.subr.mxu0 0.0
    %342 = vmatpush1.msra.mxu0 %v286
    %343 = vmatprep.subr.mxu0 0.0
    %344 = vmatpush1.msra.mxu0 %v287
    %345 = vmatprep.subr.mxu0 0.0
    %346 = vmatpush1.msra.mxu0 %v288
    %347 = vmatprep.subr.mxu0 0.0
    %348 = vmatpush1.msra.mxu0 %v289
    %349 = vmatprep.subr.mxu0 0.0
    %350 = vmatpush1.msra.mxu0 %v290
    %351 = vmatprep.subr.mxu0 0.0
    %352 = vmatpush1.msra.mxu0 %v291
    %353 = vmatprep.subr.mxu0 0.0
    %354 = vmatpush1.msra.mxu0 %v292
    %355 = vmatprep.subr.mxu0 0.0
    %356 = vmatpush1.msra.mxu0 %v293
    %357 = vmatprep.subr.mxu0 0.0
    %358 = vmatpush1.msra.mxu0 %v294
    %359 = vmatprep.subr.mxu0 0.0
    %360 = vmatpush1.msra.mxu0 %v295
    %361 = vmatprep.subr.mxu0 0.0
    %362 = vmatpush1.msra.mxu0 %v296
    %363 = vmatprep.subr.mxu0 0.0
    %364 = vmatpush1.msra.mxu0 %v297
    %365 = vmatprep.subr.mxu0 0.0
    %366 = vmatpush1.msra.mxu0 %v298
    %367 = vmatprep.subr.mxu0 0.0
    %368 = vmatpush1.msra.mxu0 %v299
    %369 = vmatprep.subr.mxu0 0.0
    %370 = vmatpush1.msra.mxu0 %v300
    %371 = vmatprep.subr.mxu0 0.0
    %372 = vmatpush1.msra.mxu0 %v301
    %373 = vmatprep.mubr.f32.mxu0 %v269
    %374 = vmatmul.mubr.f32.gmra.mrb[0].mxu0 %v268
    %v375 = vpop.f32.mrb[0].mxu0
    %v376 = vadd.f32 %v307, %v375
    %v377 = vpop.f32.mrb[0].mxu0
    %378 = vdwg.mxu0
    %v379 = vmax.f32 %v376, 0.0
    %v380 = vld [vmem:[#allocation8] sm:$0xff]
    %v381 = vld [vmem:[#allocation8 + $0x8] sm:$0xff]
    %v382 = vld [vmem:[#allocation8 + $0x10] sm:$0xff]
    %v383 = vld [vmem:[#allocation8 + $0x18] sm:$0xff]
    %v384 = vld [vmem:[#allocation8 + $0x20] sm:$0xff]
    %v385 = vld [vmem:[#allocation8 + $0x28] sm:$0xff]
    %v386 = vld [vmem:[#allocation8 + $0x30] sm:$0xff]
    %v387 = vld [vmem:[#allocation8 + $0x38] sm:$0xff]
    %v388 = vld [vmem:[#allocation8 + $0x40] sm:$0xff]
    %v389 = vld [vmem:[#allocation8 + $0x48] sm:$0xff]
    %v390 = vld [vmem:[#allocation8 + $0x50] sm:$0xff]
    %v391 = vld [vmem:[#allocation8 + $0x58] sm:$0xff]
    %v392 = vld [vmem:[#allocation8 + $0x60] sm:$0xff]
    %v393 = vld [vmem:[#allocation8 + $0x68] sm:$0xff]
    %v394 = vld [vmem:[#allocation8 + $0x70] sm:$0xff]
    %v395 = vld [vmem:[#allocation8 + $0x78] sm:$0xff]
    %v396 = vld [vmem:[%s6] sm:$0x1]
    %v398 = vlaneseq
    %v399 = vshrl.u32 %v398, 7
    %v400 = vsub.s32 0, %v399
    %v401 = vrot.slane %v396, %v400
    %403 = vmatprep.subr.mxu0 0.0
    %404 = vmatpush1.msra.mxu0 %v380
    %405 = vmatprep.subr.mxu0 0.0
    %406 = vmatpush1.msra.mxu0 %v381
    %407 = vmatprep.subr.mxu0 0.0
    %408 = vmatpush1.msra.mxu0 %v382
    %409 = vmatprep.subr.mxu0 0.0
    %410 = vmatpush1.msra.mxu0 %v383
    %411 = vmatprep.subr.mxu0 0.0
    %412 = vmatpush1.msra.mxu0 %v384
    %413 = vmatprep.subr.mxu0 0.0
    %414 = vmatpush1.msra.mxu0 %v385
    %415 = vmatprep.subr.mxu0 0.0
    %416 = vmatpush1.msra.mxu0 %v386
    %417 = vmatprep.subr.mxu0 0.0
    %418 = vmatpush1.msra.mxu0 %v387
    %419 = vmatprep.subr.mxu0 0.0
    %420 = vmatpush1.msra.mxu0 %v388
    %421 = vmatprep.subr.mxu0 0.0
    %422 = vmatpush1.msra.mxu0 %v389
    %423 = vmatprep.subr.mxu0 0.0
    %424 = vmatpush1.msra.mxu0 %v390
    %425 = vmatprep.subr.mxu0 0.0
    %426 = vmatpush1.msra.mxu0 %v391
    %427 = vmatprep.subr.mxu0 0.0
    %428 = vmatpush1.msra.mxu0 %v392
    %429 = vmatprep.subr.mxu0 0.0
    %430 = vmatpush1.msra.mxu0 %v393
    %431 = vmatprep.subr.mxu0 0.0
    %432 = vmatpush1.msra.mxu0 %v394
    %433 = vmatprep.subr.mxu0 0.0
    %434 = vmatpush1.msra.mxu0 %v395
    %435 = vmatprep.subr.mxu0 0.0
    %436 = vmatpush1.msra.mxu0 0.0
    %437 = vmatprep.subr.mxu0 0.0
    %438 = vmatpush1.msra.mxu0 0.0
    %439 = vmatprep.subr.mxu0 0.0
    %440 = vmatpush1.msra.mxu0 0.0
    %441 = vmatprep.subr.mxu0 0.0
    %442 = vmatpush1.msra.mxu0 0.0
    %443 = vmatprep.subr.mxu0 0.0
    %444 = vmatpush1.msra.mxu0 0.0
    %445 = vmatprep.subr.mxu0 0.0
    %446 = vmatpush1.msra.mxu0 0.0
    %447 = vmatprep.subr.mxu0 0.0
    %448 = vmatpush1.msra.mxu0 0.0
    %449 = vmatprep.subr.mxu0 0.0
    %450 = vmatpush1.msra.mxu0 0.0
    %451 = vmatprep.subr.mxu0 0.0
    %452 = vmatpush1.msra.mxu0 0.0
    %453 = vmatprep.subr.mxu0 0.0
    %454 = vmatpush1.msra.mxu0 0.0
    %455 = vmatprep.subr.mxu0 0.0
    %456 = vmatpush1.msra.mxu0 0.0
    %457 = vmatprep.subr.mxu0 0.0
    %458 = vmatpush1.msra.mxu0 0.0
    %459 = vmatprep.subr.mxu0 0.0
    %460 = vmatpush1.msra.mxu0 0.0
    %461 = vmatprep.subr.mxu0 0.0
    %462 = vmatpush1.msra.mxu0 0.0
    %463 = vmatprep.subr.mxu0 0.0
    %464 = vmatpush1.msra.mxu0 0.0
    %465 = vmatprep.subr.mxu0 0.0
    %466 = vmatpush1.msra.mxu0 0.0
    %467 = vmatprep.mubr.f32.mxu0 0.0
    %468 = vmatmul.mubr.f32.gmra.mrb[0].mxu0 %v379
    %v469 = vpop.f32.mrb[0].mxu0
    %v470 = vadd.f32 %v401, %v469
    %v471 = vpop.f32.mrb[0].mxu0
    %472 = vdwg.mxu0
    %v473 = vmax.f32 %v470, 0.0
    %v474 = vld [vmem:[#allocation10] sm:$0xff]
    %v475 = vld [vmem:[#allocation10 + $0x8] sm:$0xff]
    %v476 = vld [vmem:[#allocation10 + $0x10] sm:$0xff]
    %v477 = vld [vmem:[#allocation10 + $0x18] sm:$0xff]
    %v478 = vld [vmem:[#allocation10 + $0x20] sm:$0xff]
    %v479 = vld [vmem:[#allocation10 + $0x28] sm:$0xff]
    %v480 = vld [vmem:[#allocation10 + $0x30] sm:$0xff]
    %v481 = vld [vmem:[#allocation10 + $0x38] sm:$0xff]
    %v482 = vld [vmem:[#allocation10 + $0x40] sm:$0xff]
    %v483 = vld [vmem:[#allocation10 + $0x48] sm:$0xff]
    %v484 = vld [vmem:[#allocation10 + $0x50] sm:$0xff]
    %v485 = vld [vmem:[#allocation10 + $0x58] sm:$0xff]
    %v486 = vld [vmem:[#allocation10 + $0x60] sm:$0xff]
    %v487 = vld [vmem:[#allocation10 + $0x68] sm:$0xff]
    %v488 = vld [vmem:[#allocation10 + $0x70] sm:$0xff]
    %v489 = vld [vmem:[#allocation10 + $0x78] sm:$0xff]
    %v490 = vld [vmem:[%s8] sm:$0x1]
    %v492 = vlaneseq
    %v493 = vshrl.u32 %v492, 7
    %v494 = vsub.s32 0, %v493
    %v495 = vrot.slane %v490, %v494
    %497 = vmatprep.subr.mxu0 0.0
    %498 = vmatpush1.msra.mxu0 %v474
    %499 = vmatprep.subr.mxu0 0.0
    %500 = vmatpush1.msra.mxu0 %v475
    %501 = vmatprep.subr.mxu0 0.0
    %502 = vmatpush1.msra.mxu0 %v476
    %503 = vmatprep.subr.mxu0 0.0
    %504 = vmatpush1.msra.mxu0 %v477
    %505 = vmatprep.subr.mxu0 0.0
    %506 = vmatpush1.msra.mxu0 %v478
    %507 = vmatprep.subr.mxu0 0.0
    %508 = vmatpush1.msra.mxu0 %v479
    %509 = vmatprep.subr.mxu0 0.0
    %510 = vmatpush1.msra.mxu0 %v480
    %511 = vmatprep.subr.mxu0 0.0
    %512 = vmatpush1.msra.mxu0 %v481
    %513 = vmatprep.subr.mxu0 0.0
    %514 = vmatpush1.msra.mxu0 %v482
    %515 = vmatprep.subr.mxu0 0.0
    %516 = vmatpush1.msra.mxu0 %v483
    %517 = vmatprep.subr.mxu0 0.0
    %518 = vmatpush1.msra.mxu0 %v484
    %519 = vmatprep.subr.mxu0 0.0
    %520 = vmatpush1.msra.mxu0 %v485
    %521 = vmatprep.subr.mxu0 0.0
    %522 = vmatpush1.msra.mxu0 %v486
    %523 = vmatprep.subr.mxu0 0.0
    %524 = vmatpush1.msra.mxu0 %v487
    %525 = vmatprep.subr.mxu0 0.0
    %526 = vmatpush1.msra.mxu0 %v488
    %527 = vmatprep.subr.mxu0 0.0
    %528 = vmatpush1.msra.mxu0 %v489
    %529 = vmatprep.subr.mxu0 0.0
    %530 = vmatpush1.msra.mxu0 0.0
    %531 = vmatprep.subr.mxu0 0.0
    %532 = vmatpush1.msra.mxu0 0.0
    %533 = vmatprep.subr.mxu0 0.0
    %534 = vmatpush1.msra.mxu0 0.0
    %535 = vmatprep.subr.mxu0 0.0
    %536 = vmatpush1.msra.mxu0 0.0
    %537 = vmatprep.subr.mxu0 0.0
    %538 = vmatpush1.msra.mxu0 0.0
    %539 = vmatprep.subr.mxu0 0.0
    %540 = vmatpush1.msra.mxu0 0.0
    %541 = vmatprep.subr.mxu0 0.0
    %542 = vmatpush1.msra.mxu0 0.0
    %543 = vmatprep.subr.mxu0 0.0
    %544 = vmatpush1.msra.mxu0 0.0
    %545 = vmatprep.subr.mxu0 0.0
    %546 = vmatpush1.msra.mxu0 0.0
    %547 = vmatprep.subr.mxu0 0.0
    %548 = vmatpush1.msra.mxu0 0.0
    %549 = vmatprep.subr.mxu0 0.0
    %550 = vmatpush1.msra.mxu0 0.0
    %551 = vmatprep.subr.mxu0 0.0
    %552 = vmatpush1.msra.mxu0 0.0
    %553 = vmatprep.subr.mxu0 0.0
    %554 = vmatpush1.msra.mxu0 0.0
    %555 = vmatprep.subr.mxu0 0.0
    %556 = vmatpush1.msra.mxu0 0.0
    %557 = vmatprep.subr.mxu0 0.0
    %558 = vmatpush1.msra.mxu0 0.0
    %559 = vmatprep.subr.mxu0 0.0
    %560 = vmatpush1.msra.mxu0 0.0
    %561 = vmatprep.mubr.f32.mxu0 0.0
    %562 = vmatmul.mubr.f32.gmra.mrb[0].mxu0 %v473
    %v563 = vpop.f32.mrb[0].mxu0
    %v564 = vadd.f32 %v495, %v563
    %v565 = vpop.f32.mrb[0].mxu0
    %566 = vdwg.mxu0
    %v567 = vmax.f32 %v564, 0.0
    %v568 = vld [vmem:[#allocation11] sm:$0xff]
    %v569 = vld [vmem:[#allocation11 + $0x8] sm:$0xff]
    %v570 = vld [vmem:[#allocation11 + $0x10] sm:$0xff]
    %v571 = vld [vmem:[#allocation11 + $0x18] sm:$0xff]
    %v572 = vld [vmem:[#allocation11 + $0x20] sm:$0xff]
    %v573 = vld [vmem:[#allocation11 + $0x28] sm:$0xff]
    %v574 = vld [vmem:[#allocation11 + $0x30] sm:$0xff]
    %v575 = vld [vmem:[#allocation11 + $0x38] sm:$0xff]
    %v576 = vld [vmem:[#allocation11 + $0x40] sm:$0xff]
    %v577 = vld [vmem:[#allocation11 + $0x48] sm:$0xff]
    %v578 = vld [vmem:[#allocation11 + $0x50] sm:$0xff]
    %v579 = vld [vmem:[#allocation11 + $0x58] sm:$0xff]
    %v580 = vld [vmem:[#allocation11 + $0x60] sm:$0xff]
    %v581 = vld [vmem:[#allocation11 + $0x68] sm:$0xff]
    %v582 = vld [vmem:[#allocation11 + $0x70] sm:$0xff]
    %v583 = vld [vmem:[#allocation11 + $0x78] sm:$0xff]
    %v584 = vld [vmem:[%s10] sm:$0x1]
    %v586 = vlaneseq
    %v587 = vshrl.u32 %v586, 7
    %v588 = vsub.s32 0, %v587
    %v589 = vrot.slane %v584, %v588
    %591 = vmatprep.subr.mxu0 0.0
    %592 = vmatpush1.msra.mxu0 %v568
    %593 = vmatprep.subr.mxu0 0.0
    %594 = vmatpush1.msra.mxu0 %v569
    %595 = vmatprep.subr.mxu0 0.0
    %596 = vmatpush1.msra.mxu0 %v570
    %597 = vmatprep.subr.mxu0 0.0
    %598 = vmatpush1.msra.mxu0 %v571
    %599 = vmatprep.subr.mxu0 0.0
    %600 = vmatpush1.msra.mxu0 %v572
    %601 = vmatprep.subr.mxu0 0.0
    %602 = vmatpush1.msra.mxu0 %v573
    %603 = vmatprep.subr.mxu0 0.0
    %604 = vmatpush1.msra.mxu0 %v574
    %605 = vmatprep.subr.mxu0 0.0
    %606 = vmatpush1.msra.mxu0 %v575
    %607 = vmatprep.subr.mxu0 0.0
    %608 = vmatpush1.msra.mxu0 %v576
    %609 = vmatprep.subr.mxu0 0.0
    %610 = vmatpush1.msra.mxu0 %v577
    %611 = vmatprep.subr.mxu0 0.0
    %612 = vmatpush1.msra.mxu0 %v578
    %613 = vmatprep.subr.mxu0 0.0
    %614 = vmatpush1.msra.mxu0 %v579
    %615 = vmatprep.subr.mxu0 0.0
    %616 = vmatpush1.msra.mxu0 %v580
    %617 = vmatprep.subr.mxu0 0.0
    %618 = vmatpush1.msra.mxu0 %v581
    %619 = vmatprep.subr.mxu0 0.0
    %620 = vmatpush1.msra.mxu0 %v582
    %621 = vmatprep.subr.mxu0 0.0
    %622 = vmatpush1.msra.mxu0 %v583
    %623 = vmatprep.subr.mxu0 0.0
    %624 = vmatpush1.msra.mxu0 0.0
    %625 = vmatprep.subr.mxu0 0.0
    %626 = vmatpush1.msra.mxu0 0.0
    %627 = vmatprep.subr.mxu0 0.0
    %628 = vmatpush1.msra.mxu0 0.0
    %629 = vmatprep.subr.mxu0 0.0
    %630 = vmatpush1.msra.mxu0 0.0
    %631 = vmatprep.subr.mxu0 0.0
    %632 = vmatpush1.msra.mxu0 0.0
    %633 = vmatprep.subr.mxu0 0.0
    %634 = vmatpush1.msra.mxu0 0.0
    %635 = vmatprep.subr.mxu0 0.0
    %636 = vmatpush1.msra.mxu0 0.0
    %637 = vmatprep.subr.mxu0 0.0
    %638 = vmatpush1.msra.mxu0 0.0
    %639 = vmatprep.subr.mxu0 0.0
    %640 = vmatpush1.msra.mxu0 0.0
    %641 = vmatprep.subr.mxu0 0.0
    %642 = vmatpush1.msra.mxu0 0.0
    %643 = vmatprep.subr.mxu0 0.0
    %644 = vmatpush1.msra.mxu0 0.0
    %645 = vmatprep.subr.mxu0 0.0
    %646 = vmatpush1.msra.mxu0 0.0
    %647 = vmatprep.subr.mxu0 0.0
    %648 = vmatpush1.msra.mxu0 0.0
    %649 = vmatprep.subr.mxu0 0.0
    %650 = vmatpush1.msra.mxu0 0.0
    %651 = vmatprep.subr.mxu0 0.0
    %652 = vmatpush1.msra.mxu0 0.0
    %653 = vmatprep.subr.mxu0 0.0
    %654 = vmatpush1.msra.mxu0 0.0
    %655 = vmatprep.mubr.f32.mxu0 0.0
    %656 = vmatmul.mubr.f32.gmra.mrb[0].mxu0 %v567
    %v657 = vpop.f32.mrb[0].mxu0
    %v658 = vadd.f32 %v589, %v657
    %v659 = vpop.f32.mrb[0].mxu0
    %660 = vdwg.mxu0
    %v661 = vsub.f32 0.0, %v658
    %v662 = vmul.f32 %v661, 1.442695
    %v663 = vpow.pop %v662
    %v664 = vadd.f32 %v663, 1.0
    %v665 = vrcp.pop %v664
    %666 = vst [vmem:[#allocation13] sm:$0xff] %v665
    // Predicated region
    $region70: #{tpu_custom_call.1} parent=1 // pred_check
      _
    $region71: #{tpu_custom_call.1} parent=1 // pred_check_branch
      %668 = sbr.rel (0) target = $region73
    $region72: #{tpu_custom_call.1} parent=1 // pred_region
      %s670 = ssub.s32 128, 128
      %671 = vsyncadd [#allocation4], %s670
      %s673 = sshll.u32 [#allocation13], 4
      %s674 = int_to_ptr.vmem [resolvable:$true] %s673
      %676 = dma.vmem_to_hbm [thread:$0]  %s674, 128, %s11, [#allocation4]
    $region73: #{tpu_custom_call.1} parent=1 // pred_fallthru
      _
    // Predicated region
    $region74: #{tpu_custom_call.1} parent=1 // pred_check
      _
    $region75: #{tpu_custom_call.1} parent=1 // pred_check_branch
      %678 = sbr.rel (0) target = $region77
    $region76: #{tpu_custom_call.1} parent=1 // pred_region
      %679 = dma.done [#allocation4], 128
    $region77: #{tpu_custom_call.1} parent=1 // pred_fallthru
      _
    %680 = vsyncpa [#allocation3], 1
    %681 = vsyncpa [#allocation6], 1
    %682 = vsyncpa [#allocation9], 1
    %683 = vsyncpa [#allocation12], 1
    %684 = vsyncpa [#allocation4], 1

</llo_original>
